<compile_context>
chip_gen: v7x
topology: tpu7x:2x2x1
jax: 0.10.0
libtpu: 0.0.40
codegen_flags: <defaults>
</compile_context>

<pallas_src>
import jax
import jax.numpy as jnp
from jax.experimental import pallas as pl
from jax.experimental.pallas import tpu as pltpu


def _mlp_kernel(x_ref, w1_ref, b1_ref, w2_ref, b2_ref, o_ref):
    # Layer 1 on the MXU: (TB, D) @ (D, H) -> (TB, H), f32 accumulation.
    h = jnp.dot(x_ref[...], w1_ref[...], preferred_element_type=jnp.float32)
    h = h + b1_ref[...]
    # Sigmoid: exp rides the EUP slot; reciprocal kept exact (approx=True would
    # also move the divide onto the EUP at ~1e-4 relative error if VALU binds).
    h = pl.reciprocal(1.0 + jnp.exp(-h), approx=False)
    # Layer 2 in transposed orientation so the result is produced lane-dense:
    # (1, H) . (TB, H)^T -> (1, TB).  One tiny MXU pass per tile; avoids the
    # 1-lane-wide (TB, 1) column that would force masked stores + 1-elem-row
    # writeback DMAs.
    out = jnp.einsum("oh,bh->ob", w2_ref[...], h,
                     preferred_element_type=jnp.float32)
    out = out + b2_ref[0]                      # b2 scalar from SMEM
    o_ref[...] = out.astype(o_ref.dtype)


def _round_up(n: int, m: int) -> int:
    return ((n + m - 1) // m) * m


def net_forward(x, w1, b1, w2, b2, *, tb=512):
    """x:(B,D); w1:(D,H); b1:(H,); w2:(H,1); b2:(1,). Returns (B,1) float32."""
    B, D = x.shape
    H = w1.shape[1]

    # Batch tile: a multiple of 128 so the (1, TB) output block is lane-dense and
    # the (TB, D) input block is sublane-aligned for both f32 and bf16 inputs.
    # VMEM/step ~ 2 * TB * D * itemsize (double-buffered x) + weights + out tile.
    # For very large D, shrink TB or raise CompilerParams(vmem_limit_bytes=...);
    # on v7x (64 MiB VMEM/TC) use roughly half the v6e/v5e tile.
    tb = min(tb, _round_up(B, 128))
    assert tb % 128 == 0
    grid_b = pl.cdiv(B, tb)          # B need not divide TB: last tile is ragged,
    b_pad = grid_b * tb              # its garbage columns are sliced off below.

    w1 = w1.astype(x.dtype)                          # stream weights like x
    b1_row = b1.reshape(1, H).astype(jnp.float32)
    w2_row = w2.reshape(1, H).astype(jnp.float32)    # (H,1) -> (1,H)
    b2_vec = b2.reshape(1).astype(jnp.float32)

    out_row = pl.pallas_call(
        _mlp_kernel,
        out_shape=jax.ShapeDtypeStruct((1, b_pad), jnp.float32),
        grid_spec=pltpu.PrefetchScalarGridSpec(
            num_scalar_prefetch=0,
            grid=(grid_b,),
            in_specs=[
                pl.BlockSpec((tb, D), lambda i: (i, 0)),        # x: streamed
                pl.BlockSpec((D, H), lambda i: (0, 0)),         # w1: resident
                pl.BlockSpec((1, H), lambda i: (0, 0)),         # b1: resident
                pl.BlockSpec((1, H), lambda i: (0, 0)),         # w2 row: resident
                pl.BlockSpec(memory_space=pltpu.MemorySpace.SMEM),  # b2 scalar
            ],
            out_specs=pl.BlockSpec((1, tb), lambda i: (0, i)),  # lane-dense row
        ),
        compiler_params=pltpu.CompilerParams(
            dimension_semantics=("parallel",),   # shard batch tiles across TCs
        ),
    )(x, w1, b1_row, w2_row, b2_vec)

    # (1, B_pad) -> (B, 1); row-major reshape preserves batch order, padded tail
    # of the ragged last tile is dropped.
    return out_row.reshape(b_pad, 1)[:B]


def _reference(x, w1, b1, w2, b2):
    h = jax.nn.sigmoid(x.astype(jnp.float32) @ w1.astype(jnp.float32) + b1)
    return h @ w2 + b2


if __name__ == "__main__":
    key = jax.random.PRNGKey(0)
    B, D, H = 1000, 32, 10          # B deliberately NOT a multiple of the tile

    kx, kw1, kb1, kw2, kb2 = jax.random.split(key, 5)
    x = jax.random.normal(kx, (B, D), dtype=jnp.float32)
    w1 = jax.random.uniform(kw1, (D, H), jnp.float32, -1.0, 1.0) / jnp.sqrt(D)
    b1 = jax.random.uniform(kb1, (H,), jnp.float32, -1.0, 1.0) / jnp.sqrt(D)
    w2 = jax.random.uniform(kw2, (H, 1), jnp.float32, -1.0, 1.0) / jnp.sqrt(H)
    b2 = jax.random.uniform(kb2, (1,), jnp.float32, -1.0, 1.0) / jnp.sqrt(H)

    ref = _reference(x, w1, b1, w2, b2)

    # f32 path: 4 batch tiles of 256 rows, last one ragged (1000 % 256 != 0).
    out = jax.block_until_ready(net_forward(x, w1, b1, w2, b2, tb=256))
    assert out.shape == (B, 1), out.shape
    assert jnp.allclose(out, ref, atol=2e-5, rtol=1e-4)

    # bf16-streaming path: halves HBM read bytes on this mem-bound kernel;
    # accumulation stays f32 so only input-rounding error remains.
    out_bf16 = jax.block_until_ready(
        net_forward(x.astype(jnp.bfloat16), w1.astype(jnp.bfloat16),
                    b1, w2, b2, tb=256))
    assert out_bf16.shape == (B, 1)
    assert jnp.allclose(out_bf16, ref, atol=5e-2, rtol=5e-2)

    print("KERNEL_OK")
</pallas_src>

<mosaic_0001>
module attributes {stable_mosaic.version = 11 : i64} {
  func.func @_mlp_kernel(%arg0: i32, %arg1: memref<256x32xf32, #tpu.memory_space<vmem>>, %arg2: memref<32x10xf32, #tpu.memory_space<vmem>>, %arg3: memref<1x10xf32, #tpu.memory_space<vmem>>, %arg4: memref<1x10xf32, #tpu.memory_space<vmem>>, %arg5: memref<1xf32, #tpu.memory_space<smem>>, %arg6: memref<1x256xf32, #tpu.memory_space<vmem>>) attributes {dimension_semantics = [#tpu.dimension_semantics<parallel>], iteration_bounds = array<i64: 4>, scalar_prefetch = 0 : i64, scratch_operands = 0 : i64, tpu.core_type = #tpu.core_type<tc>, window_params = [{transform_indices = @transform_0, window_bounds = array<i64: 256, 32>}, {pipeline_mode = #tpu.pipeline_mode<synchronous>, transform_indices = @transform_1, window_bounds = array<i64: 32, 10>}, {pipeline_mode = #tpu.pipeline_mode<synchronous>, transform_indices = @transform_2, window_bounds = array<i64: 1, 10>}, {pipeline_mode = #tpu.pipeline_mode<synchronous>, transform_indices = @transform_3, window_bounds = array<i64: 1, 10>}, {transform_indices = @transform_4, window_bounds = array<i64: 1>}, {transform_indices = @transform_5, window_bounds = array<i64: 1, 256>}]} {
    %c0 = arith.constant 0 : index
    %c0_0 = arith.constant 0 : index
    %0 = vector.load %arg1[%c0, %c0_0] : memref<256x32xf32, #tpu.memory_space<vmem>>, vector<256x32xf32>
    %c0_1 = arith.constant 0 : index
    %c0_2 = arith.constant 0 : index
    %1 = vector.load %arg2[%c0_1, %c0_2] : memref<32x10xf32, #tpu.memory_space<vmem>>, vector<32x10xf32>
    %cst = arith.constant dense<0.000000e+00> : vector<256x10xf32>
    %2 = tpu.matmul %0, %1, %cst {dimension_numbers = #tpu.dot_dimension_numbers<[1], [0], [0], [1], [0, 0, 1, 1], [], []>} : vector<256x32xf32>, vector<32x10xf32>, vector<256x10xf32> -> vector<256x10xf32>
    %c0_3 = arith.constant 0 : index
    %c0_4 = arith.constant 0 : index
    %3 = vector.load %arg3[%c0_3, %c0_4] : memref<1x10xf32, #tpu.memory_space<vmem>>, vector<1x10xf32>
    %4 = vector.broadcast %3 : vector<1x10xf32> to vector<256x10xf32>
    %5 = arith.addf %2, %4 : vector<256x10xf32>
    %cst_5 = arith.constant 0.000000e+00 : f32
    %6 = vector.broadcast %cst_5 : f32 to vector<256x10xf32>
    %7 = arith.subf %6, %5 : vector<256x10xf32>
    %8 = math.exp %7 : vector<256x10xf32>
    %cst_6 = arith.constant 1.000000e+00 : f32
    %9 = vector.broadcast %cst_6 : f32 to vector<256x10xf32>
    %10 = arith.addf %9, %8 : vector<256x10xf32>
    %11 = tpu.reciprocal %10 : vector<256x10xf32> -> vector<256x10xf32>
    %c0_7 = arith.constant 0 : index
    %c0_8 = arith.constant 0 : index
    %12 = vector.load %arg4[%c0_7, %c0_8] : memref<1x10xf32, #tpu.memory_space<vmem>>, vector<1x10xf32>
    "tpu.trace_start"() <{level = 10 : i32, message = "oh,bh->ob"}> : () -> ()
    %cst_9 = arith.constant dense<0.000000e+00> : vector<1x256xf32>
    %13 = tpu.matmul %12, %11, %cst_9 {dimension_numbers = #tpu.dot_dimension_numbers<[1], [1], [0], [0], [0, 0, 1, 0], [], []>} : vector<1x10xf32>, vector<256x10xf32>, vector<1x256xf32> -> vector<1x256xf32>
    "tpu.trace_stop"() : () -> ()
    %c0_10 = arith.constant 0 : index
    %14 = memref.load %arg5[%c0_10] : memref<1xf32, #tpu.memory_space<smem>>
    %15 = vector.broadcast %14 : f32 to vector<1x256xf32>
    %16 = arith.addf %13, %15 : vector<1x256xf32>
    %c0_11 = arith.constant 0 : index
    %c0_12 = arith.constant 0 : index
    %17 = vector.load %arg6[%c0_11, %c0_12] : memref<1x256xf32, #tpu.memory_space<vmem>>, vector<1x256xf32>
    tpu.vector_store %arg6[%c0_11, %c0_12], %16 {strides = array<i32>} : memref<1x256xf32, #tpu.memory_space<vmem>>, vector<1x256xf32>,
    return
  }
  func.func @transform_0(%arg0: i32) -> (i32, i32) {
    %c0_i32 = arith.constant 0 : i32
    %c0_i32_0 = arith.constant 0 : i32
    return %arg0, %c0_i32 : i32, i32
  }
  func.func @transform_1(%arg0: i32) -> (i32, i32) {
    %c0_i32 = arith.constant 0 : i32
    %c0_i32_0 = arith.constant 0 : i32
    %c0_i32_1 = arith.constant 0 : i32
    return %c0_i32, %c0_i32_0 : i32, i32
  }
  func.func @transform_2(%arg0: i32) -> (i32, i32) {
    %c0_i32 = arith.constant 0 : i32
    %c0_i32_0 = arith.constant 0 : i32
    %c0_i32_1 = arith.constant 0 : i32
    return %c0_i32, %c0_i32_0 : i32, i32
  }
  func.func @transform_3(%arg0: i32) -> (i32, i32) {
    %c0_i32 = arith.constant 0 : i32
    %c0_i32_0 = arith.constant 0 : i32
    %c0_i32_1 = arith.constant 0 : i32
    return %c0_i32, %c0_i32_0 : i32, i32
  }
  func.func @transform_4(%arg0: i32) -> i32 {
    %c0_i32 = arith.constant 0 : i32
    %c0_i32_0 = arith.constant 0 : i32
    return %c0_i32 : i32
  }
  func.func @transform_5(%arg0: i32) -> (i32, i32) {
    %c0_i32 = arith.constant 0 : i32
    %c0_i32_0 = arith.constant 0 : i32
    return %c0_i32, %arg0 : i32, i32
  }
}

</mosaic_0001>

<llo_original>
// kernel: tpu_custom_call.1
$region0: #{tpu_custom_call.1}
  #allocation0 [shape = 'u32[]', space=smem, size = 0x4, offset = 0x4, fixed_abs, tag = 'smem constant byte address 0x4 - core index']
  #allocation1 [shape = 'u32[144,128]{1,0:T(1,128)}', space=vmem, size = 0x12000, scoped, tag = 'internal scratch']
  #allocation2 [shape = 'f32[1]{0:T(128)S(6)}', space=smem, size = 0x200, scoped, tag = 'scoped memory for tpu_custom_call.1']
  %s0 = inlined_call_operand.vmem [shape: f32[1000,32], index: 0, kind: input, shape index: {}]
  %s1 = inlined_call_operand.vmem [shape: f32[32,10], index: 1, kind: input, shape index: {}]
  %s2 = inlined_call_operand.vmem [shape: f32[1,10], index: 2, kind: input, shape index: {}]
  %s3 = inlined_call_operand.vmem [shape: f32[1,10], index: 3, kind: input, shape index: {}]
  %s4 = inlined_call_operand.<no memory space> [shape: f32[1], index: 4, kind: input, shape index: {}]
  %s5 = inlined_call_operand.hbm [shape: f32[1,1024], index: 5, kind: output, shape index: {}]
  %s6 = sld [smem:[#allocation0]]
  $region53: #{tpu_custom_call.1} parent=0
    _
  %s8 = ssub.s32 1, %s6
  %s9 = scalar_select 0, %s8, %s6
  %10 = sst [smem:[#allocation2]] %s4
  $region1: #{tpu_custom_call.1} parent=0
    #allocation3 [shape = 'u8[2048]{0}', space=vmem, size = 0x800, scoped, tag = 'output window, operand 0']
    #allocation4 [shape = 's32[2]{0}', space=sflag, size = 0x8, scoped, tag = 'scoped memory for tpu_custom_call.1']
    %11 = vsyncpa [#allocation4], 0
    %s12 = scalar_lea.sflag [#allocation4], 1
    %13 = vsyncpa %s12, 0
    loop: start=0, step=1, limit=6
    $region2: #{tpu_custom_call.1} parent=1 // loop_pre_header
      _
    $region3: #{tpu_custom_call.1} parent=1 // loop_header
      %s15 = sphi 0, %s19
      %p16 = scmp.ge.s32.totalorder %s15, 6
      %s25 = sphi 0, %s27
      %s28 = sphi 0, %s25
      %s29 = sphi 0, %s28
      %s45 = sphi 0, %s29
      %s49 = sphi 0, %s49
      %s51 = sphi 0, %s49
      %s52 = sphi 0, %s51
      %s66 = sphi 0, %s52
      %s70 = sphi 0, %s70
      %s72 = sphi 0, %s70
      %s73 = sphi 0, %s72
      %s87 = sphi 0, %s73
      %s91 = sphi 0, %s91
      %s93 = sphi 0, %s91
      %s94 = sphi 0, %s93
      %s108 = sphi 0, %s94
      %s112 = sphi 0, %s112
      %s114 = sphi 0, %s112
      %s115 = sphi 0, %s114
      %s129 = sphi 0, %s115
      %s135 = sphi 0, %s137
      %s138 = sphi 0, %s135
      %s139 = sphi 0, %s138
      %s155 = sphi 0, %s139
    $region4: #{tpu_custom_call.1} parent=1 // loop_header_branch
      %18 = sbr.rel (%p16) target = $region8
    $region5: #{tpu_custom_call.1} parent=1 // loop_body
      %s20 = ssub.s32 %s15, 1
      %s21 = ssub.s32 %s15, 2
      %s22 = sadd.s32 %s15, 1
      %s23 = ssub.s32 %s15, %s22
      %p24 = scmp.eq.s32.totalorder %s23, 0
      %s26 = sadd.s32 %s25, 1
      %s27 = scalar_select %p24, %s25, %s26
      %p30 = pneg %p24
      %p31 = scmp.eq.s32.totalorder %s15, 3
      %p32 = por %p30, %p31
      %p33 = scmp.ne.s32.totalorder %s25, %s28
      %p34 = scmp.eq.s32.totalorder %s15, 0
      %p35 = por %p33, %p34
      %p36 = scmp.ne.s32.totalorder %s25, %s28
      %p37 = scmp.eq.s32.totalorder %s20, 3
      %p38 = por %p36, %p37
      %p39 = scmp.ne.s32.totalorder %s28, %s29
      %p40 = scmp.eq.s32.totalorder %s20, 0
      %p41 = por %p39, %p40
      %p42 = scmp.ne.s32.totalorder %s28, %s29
      %p43 = scmp.eq.s32.totalorder %s21, 3
      %p44 = por %p42, %p43
      %p46 = scmp.ne.s32.totalorder %s29, %s45
      %p47 = scmp.eq.s32.totalorder %s21, 0
      %p48 = por %p46, %p47
      %s50 = sadd.s32 %s49, 1
      %p53 = scmp.eq.s32.totalorder %s15, 3
      %p54 = scmp.ne.s32.totalorder %s49, %s51
      %p55 = scmp.eq.s32.totalorder %s15, 0
      %p56 = por %p54, %p55
      %p57 = scmp.ne.s32.totalorder %s49, %s51
      %p58 = scmp.eq.s32.totalorder %s20, 3
      %p59 = por %p57, %p58
      %p60 = scmp.ne.s32.totalorder %s51, %s52
      %p61 = scmp.eq.s32.totalorder %s20, 0
      %p62 = por %p60, %p61
      %p63 = scmp.ne.s32.totalorder %s51, %s52
      %p64 = scmp.eq.s32.totalorder %s21, 3
      %p65 = por %p63, %p64
      %p67 = scmp.ne.s32.totalorder %s52, %s66
      %p68 = scmp.eq.s32.totalorder %s21, 0
      %p69 = por %p67, %p68
      %s71 = sadd.s32 %s70, 1
      %p74 = scmp.eq.s32.totalorder %s15, 3
      %p75 = scmp.ne.s32.totalorder %s70, %s72
      %p76 = scmp.eq.s32.totalorder %s15, 0
      %p77 = por %p75, %p76
      %p78 = scmp.ne.s32.totalorder %s70, %s72
      %p79 = scmp.eq.s32.totalorder %s20, 3
      %p80 = por %p78, %p79
      %p81 = scmp.ne.s32.totalorder %s72, %s73
      %p82 = scmp.eq.s32.totalorder %s20, 0
      %p83 = por %p81, %p82
      %p84 = scmp.ne.s32.totalorder %s72, %s73
      %p85 = scmp.eq.s32.totalorder %s21, 3
      %p86 = por %p84, %p85
      %p88 = scmp.ne.s32.totalorder %s73, %s87
      %p89 = scmp.eq.s32.totalorder %s21, 0
      %p90 = por %p88, %p89
      %s92 = sadd.s32 %s91, 1
      %p95 = scmp.eq.s32.totalorder %s15, 3
      %p96 = scmp.ne.s32.totalorder %s91, %s93
      %p97 = scmp.eq.s32.totalorder %s15, 0
      %p98 = por %p96, %p97
      %p99 = scmp.ne.s32.totalorder %s91, %s93
      %p100 = scmp.eq.s32.totalorder %s20, 3
      %p101 = por %p99, %p100
      %p102 = scmp.ne.s32.totalorder %s93, %s94
      %p103 = scmp.eq.s32.totalorder %s20, 0
      %p104 = por %p102, %p103
      %p105 = scmp.ne.s32.totalorder %s93, %s94
      %p106 = scmp.eq.s32.totalorder %s21, 3
      %p107 = por %p105, %p106
      %p109 = scmp.ne.s32.totalorder %s94, %s108
      %p110 = scmp.eq.s32.totalorder %s21, 0
      %p111 = por %p109, %p110
      %s113 = sadd.s32 %s112, 1
      %p116 = scmp.eq.s32.totalorder %s15, 3
      %p117 = scmp.ne.s32.totalorder %s112, %s114
      %p118 = scmp.eq.s32.totalorder %s15, 0
      %p119 = por %p117, %p118
      %p120 = scmp.ne.s32.totalorder %s112, %s114
      %p121 = scmp.eq.s32.totalorder %s20, 3
      %p122 = por %p120, %p121
      %p123 = scmp.ne.s32.totalorder %s114, %s115
      %p124 = scmp.eq.s32.totalorder %s20, 0
      %p125 = por %p123, %p124
      %p126 = scmp.ne.s32.totalorder %s114, %s115
      %p127 = scmp.eq.s32.totalorder %s21, 3
      %p128 = por %p126, %p127
      %p130 = scmp.ne.s32.totalorder %s115, %s129
      %p131 = scmp.eq.s32.totalorder %s21, 0
      %p132 = por %p130, %p131
      %s133 = ssub.s32 %s15, %s22
      %p134 = scmp.eq.s32.totalorder %s133, 0
      %s136 = sadd.s32 %s135, 1
      %s137 = scalar_select %p134, %s135, %s136
      %p140 = pneg %p134
      %p141 = scmp.eq.s32.totalorder %s15, 3
      %p142 = por %p140, %p141
      %p143 = scmp.ne.s32.totalorder %s135, %s138
      %p144 = scmp.eq.s32.totalorder %s15, 0
      %p145 = por %p143, %p144
      %p146 = scmp.ne.s32.totalorder %s135, %s138
      %p147 = scmp.eq.s32.totalorder %s20, 3
      %p148 = por %p146, %p147
      %p149 = scmp.ne.s32.totalorder %s138, %s139
      %p150 = scmp.eq.s32.totalorder %s20, 0
      %p151 = por %p149, %p150
      %p152 = scmp.ne.s32.totalorder %s138, %s139
      %p153 = scmp.eq.s32.totalorder %s21, 3
      %p154 = por %p152, %p153
      %p156 = scmp.ne.s32.totalorder %s139, %s155
      %p157 = scmp.eq.s32.totalorder %s21, 0
      %p158 = por %p156, %p157
      %p159 = scmp.le.s32.totalorder 1, %s15
      %p160 = scmp.lt.s32.totalorder %s15, 5
      %p161 = pnand %p159, %p160
      %p162 = pneg %p161
      // Predicated region
      $region9: #{tpu_custom_call.1} parent=5 // pred_check
        _
      $region10: #{tpu_custom_call.1} parent=5 // pred_check_branch
        %164 = sbr.rel (%p161) target = $region12
      $region11: #{tpu_custom_call.1} parent=5 // pred_region
        %s165 = ssub.s32 %s15, 1
        // Predicated region
        $region13: #{tpu_custom_call.1} parent=11 // pred_check
          %p166 = pneg %p62
        $region14: #{tpu_custom_call.1} parent=11 // pred_check_branch
          %168 = sbr.rel (%p166) target = $region16
        $region15: #{tpu_custom_call.1} parent=11 // pred_region
          _
        $region16: #{tpu_custom_call.1} parent=11 // pred_fallthru
          _
        // Predicated region
        $region17: #{tpu_custom_call.1} parent=11 // pred_check
          %p169 = pneg %p83
        $region18: #{tpu_custom_call.1} parent=11 // pred_check_branch
          %171 = sbr.rel (%p169) target = $region20
        $region19: #{tpu_custom_call.1} parent=11 // pred_region
          _
        $region20: #{tpu_custom_call.1} parent=11 // pred_fallthru
          _
        // Predicated region
        $region21: #{tpu_custom_call.1} parent=11 // pred_check
          %p172 = pneg %p104
        $region22: #{tpu_custom_call.1} parent=11 // pred_check_branch
          %174 = sbr.rel (%p172) target = $region24
        $region23: #{tpu_custom_call.1} parent=11 // pred_region
          _
        $region24: #{tpu_custom_call.1} parent=11 // pred_fallthru
          _
        // Predicated region
        $region25: #{tpu_custom_call.1} parent=11 // pred_check
          %p175 = pneg %p125
        $region26: #{tpu_custom_call.1} parent=11 // pred_check_branch
          %177 = sbr.rel (%p175) target = $region28
        $region27: #{tpu_custom_call.1} parent=11 // pred_region
          _
        $region28: #{tpu_custom_call.1} parent=11 // pred_fallthru
          _
      $region12: #{tpu_custom_call.1} parent=5 // pred_fallthru
        _
      %p178 = scmp.lt.s32.totalorder %s15, 4
      // Predicated region
      $region29: #{tpu_custom_call.1} parent=5 // pred_check
        %p179 = pneg %p178
      $region30: #{tpu_custom_call.1} parent=5 // pred_check_branch
        %181 = sbr.rel (%p179) target = $region32
      $region31: #{tpu_custom_call.1} parent=5 // pred_region
        // Predicated region
        $region33: #{tpu_custom_call.1} parent=31 // pred_check
          %p182 = pneg %p35
        $region34: #{tpu_custom_call.1} parent=31 // pred_check_branch
          %184 = sbr.rel (%p182) target = $region36
        $region35: #{tpu_custom_call.1} parent=31 // pred_region
          %s185 = smul.u32 32, %s15
          %s186 = ssub.s32 125, %s185
          %p187 = scmp.lt.s32.totalorder %s186, 32
          %s188 = scalar_select %p187, %s186, 32
          %s189 = smul.u32 128, %s188
          %p190 = scmp.lt.s32.totalorder %s185, 124
          %s191 = scalar_select %p190, %s185, 124
          %s192 = smul.addr %s191, 8
          %s193 = scalar_lea.vmem %s0, %s192
          %s194 = smul.u32 32, %s15
          %s195 = ssub.s32 125, %s194
          %p196 = scmp.lt.s32.totalorder %s195, 32
          %s197 = scalar_select %p196, %s195, 32
          %s198 = smul.u32 128, %s197
        $region36: #{tpu_custom_call.1} parent=31 // pred_fallthru
          _
      $region32: #{tpu_custom_call.1} parent=5 // pred_fallthru
        _
      %p199 = scmp.le.s32.totalorder 1, %s15
      %p200 = scmp.lt.s32.totalorder %s15, 5
      %p201 = pnand %p199, %p200
      %p202 = pneg %p201
      // Predicated region
      $region37: #{tpu_custom_call.1} parent=5 // pred_check
        _
      $region38: #{tpu_custom_call.1} parent=5 // pred_check_branch
        %204 = sbr.rel (%p201) target = $region40
      $region39: #{tpu_custom_call.1} parent=5 // pred_region
        %s205 = ssub.s32 %s15, 1
        %s206 = smul.u32 32, %s20
        %s207 = ssub.s32 125, %s206
        %p208 = scmp.lt.s32.totalorder %s207, 32
        %s209 = scalar_select %p208, %s207, 32
        %s210 = smul.u32 128, %s209
        %p211 = scmp.lt.s32.totalorder %s206, 124
        %s212 = scalar_select %p211, %s206, 124
        %s213 = smul.addr %s212, 8
        %s214 = scalar_lea.vmem %s0, %s213
        %p215 = pneg %p41
        %p216 = pneg %p38
        %p217 = pneg %p62
        %p218 = pneg %p59
        %p219 = pneg %p83
        %p220 = pneg %p80
        %p221 = pneg %p104
        %p222 = pneg %p101
        %p223 = pneg %p125
        %p224 = pneg %p122
        %p225 = pneg %p151
        %p226 = pneg %p148
        %s227 = sand.u32 %s138, 1
        %s228 = scalar_lea.sflag [#allocation4], %s227
        %s229 = sand.u32 %s138, 1
        %s230 = smul.addr %s229, 2
        %s231 = scalar_lea.vmem [#allocation3], %s230
        %s232 = smul.u32 32, %s20
        %s233 = ssub.s32 125, %s232
        %p234 = scmp.lt.s32.totalorder %s233, 32
        %s235 = scalar_select %p234, %s233, 32
        %s236 = smul.u32 128, %s235
        %p237 = scmp.lt.s32.totalorder %s232, 124
        %s238 = scalar_select %p237, %s232, 124
        %s239 = smul.addr %s238, 8
        %s240 = scalar_lea.vmem %s0, %s239
        %s241 = smul.u32 32, %s20
        %s242 = ssub.s32 125, %s241
        %p243 = scmp.lt.s32.totalorder %s242, 32
        %s244 = scalar_select %p243, %s242, 32
        %s245 = smul.u32 128, %s244
        %s246 = smul.u32 2, %s20
        %v247 = vld [vmem:[%s240] sm:$0xff]
        %v248 = vld [vmem:[%s240 + $0x8] sm:$0xff]
        %v249 = vld [vmem:[%s240 + $0x10] sm:$0xff]
        %v250 = vld [vmem:[%s240 + $0x18] sm:$0xff]
        %v251 = vld [vmem:[%s240 + $0x20] sm:$0xff]
        %v252 = vld [vmem:[%s240 + $0x28] sm:$0xff]
        %v253 = vld [vmem:[%s240 + $0x30] sm:$0xff]
        %v254 = vld [vmem:[%s240 + $0x38] sm:$0xff]
        %v255 = vld [vmem:[%s240 + $0x40] sm:$0xff]
        %v256 = vld [vmem:[%s240 + $0x48] sm:$0xff]
        %v257 = vld [vmem:[%s240 + $0x50] sm:$0xff]
        %v258 = vld [vmem:[%s240 + $0x58] sm:$0xff]
        %v259 = vld [vmem:[%s240 + $0x60] sm:$0xff]
        %v260 = vld [vmem:[%s240 + $0x68] sm:$0xff]
        %v261 = vld [vmem:[%s240 + $0x70] sm:$0xff]
        %v262 = vld [vmem:[%s240 + $0x78] sm:$0xff]
        %v263 = vld [vmem:[%s240 + $0x80] sm:$0xff]
        %v264 = vld [vmem:[%s240 + $0x88] sm:$0xff]
        %v265 = vld [vmem:[%s240 + $0x90] sm:$0xff]
        %v266 = vld [vmem:[%s240 + $0x98] sm:$0xff]
        %v267 = vld [vmem:[%s240 + $0xa0] sm:$0xff]
        %v268 = vld [vmem:[%s240 + $0xa8] sm:$0xff]
        %v269 = vld [vmem:[%s240 + $0xb0] sm:$0xff]
        %v270 = vld [vmem:[%s240 + $0xb8] sm:$0xff]
        %v271 = vld [vmem:[%s240 + $0xc0] sm:$0xff]
        %v272 = vld [vmem:[%s240 + $0xc8] sm:$0xff]
        %v273 = vld [vmem:[%s240 + $0xd0] sm:$0xff]
        %v274 = vld [vmem:[%s240 + $0xd8] sm:$0xff]
        %v275 = vld [vmem:[%s240 + $0xe0] sm:$0xff]
        %v276 = vld [vmem:[%s240 + $0xe8] sm:$0xff]
        %v277 = vld [vmem:[%s240 + $0xf0] sm:$0xff]
        %v278 = vld [vmem:[%s240 + $0xf8] sm:$0xff]
        %v279 = vld [vmem:[%s1] sm:$0xff]
        %v280 = vld [vmem:[%s1 + $0x8] sm:$0xff]
        %v281 = vld [vmem:[%s1 + $0x10] sm:$0xff]
        %v282 = vld [vmem:[%s1 + $0x18] sm:$0xff]
        %v283 = vld [vmem:[%s2] sm:$0x1]
        %v285 = vlaneseq
        %v286 = vshrl.u32 %v285, 7
        %v287 = vsub.s32 0, %v286
        %v288 = vrot.slane %v283, %v287
        %vm290 = vcmask 261120
        %v292 = vsel %vm290, %v247, 0
        %v295 = vsel %vm290, %v248, 0
        %v298 = vsel %vm290, %v249, 0
        %v301 = vsel %vm290, %v250, 0
        %v304 = vsel %vm290, %v251, 0
        %v307 = vsel %vm290, %v252, 0
        %v310 = vsel %vm290, %v253, 0
        %v313 = vsel %vm290, %v254, 0
        %v316 = vsel %vm290, %v255, 0
        %v319 = vsel %vm290, %v256, 0
        %v322 = vsel %vm290, %v257, 0
        %v325 = vsel %vm290, %v258, 0
        %v328 = vsel %vm290, %v259, 0
        %v331 = vsel %vm290, %v260, 0
        %v334 = vsel %vm290, %v261, 0
        %v337 = vsel %vm290, %v262, 0
        %v340 = vsel %vm290, %v263, 0
        %v343 = vsel %vm290, %v264, 0
        %v346 = vsel %vm290, %v265, 0
        %v349 = vsel %vm290, %v266, 0
        %v352 = vsel %vm290, %v267, 0
        %v355 = vsel %vm290, %v268, 0
        %v358 = vsel %vm290, %v269, 0
        %v361 = vsel %vm290, %v270, 0
        %v364 = vsel %vm290, %v271, 0
        %v367 = vsel %vm290, %v272, 0
        %v370 = vsel %vm290, %v273, 0
        %v373 = vsel %vm290, %v274, 0
        %v376 = vsel %vm290, %v275, 0
        %v379 = vsel %vm290, %v276, 0
        %v382 = vsel %vm290, %v277, 0
        %v385 = vsel %vm290, %v278, 0
        %387 = vmatprep.subr.mxu0 0.0
        %388 = vmatpush1.msra.mxu0 %v279
        %389 = vmatprep.subr.mxu0 0.0
        %390 = vmatpush1.msra.mxu0 %v280
        %391 = vmatprep.subr.mxu0 0.0
        %392 = vmatpush1.msra.mxu0 %v281
        %393 = vmatprep.subr.mxu0 0.0
        %394 = vmatpush1.msra.mxu0 %v282
        %395 = vmatprep.subr.mxu0 0.0
        %396 = vmatpush1.msra.mxu0 0.0
        %397 = vmatprep.subr.mxu0 0.0
        %398 = vmatpush1.msra.mxu0 0.0
        %399 = vmatprep.subr.mxu0 0.0
        %400 = vmatpush1.msra.mxu0 0.0
        %401 = vmatprep.subr.mxu0 0.0
        %402 = vmatpush1.msra.mxu0 0.0
        %403 = vmatprep.subr.mxu0 0.0
        %404 = vmatpush1.msra.mxu0 0.0
        %405 = vmatprep.subr.mxu0 0.0
        %406 = vmatpush1.msra.mxu0 0.0
        %407 = vmatprep.subr.mxu0 0.0
        %408 = vmatpush1.msra.mxu0 0.0
        %409 = vmatprep.subr.mxu0 0.0
        %410 = vmatpush1.msra.mxu0 0.0
        %411 = vmatprep.subr.mxu0 0.0
        %412 = vmatpush1.msra.mxu0 0.0
        %413 = vmatprep.subr.mxu0 0.0
        %414 = vmatpush1.msra.mxu0 0.0
        %415 = vmatprep.subr.mxu0 0.0
        %416 = vmatpush1.msra.mxu0 0.0
        %417 = vmatprep.subr.mxu0 0.0
        %418 = vmatpush1.msra.mxu0 0.0
        %419 = vmatprep.subr.mxu0 0.0
        %420 = vmatpush1.msra.mxu0 0.0
        %421 = vmatprep.subr.mxu0 0.0
        %422 = vmatpush1.msra.mxu0 0.0
        %423 = vmatprep.subr.mxu0 0.0
        %424 = vmatpush1.msra.mxu0 0.0
        %425 = vmatprep.subr.mxu0 0.0
        %426 = vmatpush1.msra.mxu0 0.0
        %427 = vmatprep.subr.mxu0 0.0
        %428 = vmatpush1.msra.mxu0 0.0
        %429 = vmatprep.subr.mxu0 0.0
        %430 = vmatpush1.msra.mxu0 0.0
        %431 = vmatprep.subr.mxu0 0.0
        %432 = vmatpush1.msra.mxu0 0.0
        %433 = vmatprep.subr.mxu0 0.0
        %434 = vmatpush1.msra.mxu0 0.0
        %435 = vmatprep.subr.mxu0 0.0
        %436 = vmatpush1.msra.mxu0 0.0
        %437 = vmatprep.subr.mxu0 0.0
        %438 = vmatpush1.msra.mxu0 0.0
        %439 = vmatprep.subr.mxu0 0.0
        %440 = vmatpush1.msra.mxu0 0.0
        %441 = vmatprep.subr.mxu0 0.0
        %442 = vmatpush1.msra.mxu0 0.0
        %443 = vmatprep.subr.mxu0 0.0
        %444 = vmatpush1.msra.mxu0 0.0
        %445 = vmatprep.subr.mxu0 0.0
        %446 = vmatpush1.msra.mxu0 0.0
        %447 = vmatprep.subr.mxu0 0.0
        %448 = vmatpush1.msra.mxu0 0.0
        %449 = vmatprep.subr.mxu0 0.0
        %450 = vmatpush1.msra.mxu0 0.0
        %451 = vmatprep.mubr.f32.mxu0 0.0
        %452 = vmatmul.mubr.f32.gmra.mrb[0].mxu0 %v292
        %v453 = vpop.f32.mrb[0].mxu0
        %v454 = vadd.f32 %v288, %v453
        %v455 = vpop.f32.mrb[0].mxu0
        %456 = vmatprep.mubr.f32.mxu0 0.0
        %457 = vmatmul.mubr.f32.gmra.mrb[0].mxu0 %v295
        %v458 = vpop.f32.mrb[0].mxu0
        %v459 = vadd.f32 %v288, %v458
        %v460 = vpop.f32.mrb[0].mxu0
        %461 = vmatprep.mubr.f32.mxu0 0.0
        %462 = vmatmul.mubr.f32.gmra.mrb[0].mxu0 %v298
        %v463 = vpop.f32.mrb[0].mxu0
        %v464 = vadd.f32 %v288, %v463
        %v465 = vpop.f32.mrb[0].mxu0
        %466 = vmatprep.mubr.f32.mxu0 0.0
        %467 = vmatmul.mubr.f32.gmra.mrb[0].mxu0 %v301
        %v468 = vpop.f32.mrb[0].mxu0
        %v469 = vadd.f32 %v288, %v468
        %v470 = vpop.f32.mrb[0].mxu0
        %471 = vmatprep.mubr.f32.mxu0 0.0
        %472 = vmatmul.mubr.f32.gmra.mrb[0].mxu0 %v304
        %v473 = vpop.f32.mrb[0].mxu0
        %v474 = vadd.f32 %v288, %v473
        %v475 = vpop.f32.mrb[0].mxu0
        %476 = vmatprep.mubr.f32.mxu0 0.0
        %477 = vmatmul.mubr.f32.gmra.mrb[0].mxu0 %v307
        %v478 = vpop.f32.mrb[0].mxu0
        %v479 = vadd.f32 %v288, %v478
        %v480 = vpop.f32.mrb[0].mxu0
        %481 = vmatprep.mubr.f32.mxu0 0.0
        %482 = vmatmul.mubr.f32.gmra.mrb[0].mxu0 %v310
        %v483 = vpop.f32.mrb[0].mxu0
        %v484 = vadd.f32 %v288, %v483
        %v485 = vpop.f32.mrb[0].mxu0
        %486 = vmatprep.mubr.f32.mxu0 0.0
        %487 = vmatmul.mubr.f32.gmra.mrb[0].mxu0 %v313
        %v488 = vpop.f32.mrb[0].mxu0
        %v489 = vadd.f32 %v288, %v488
        %v490 = vpop.f32.mrb[0].mxu0
        %491 = vmatprep.mubr.f32.mxu0 0.0
        %492 = vmatmul.mubr.f32.gmra.mrb[0].mxu0 %v316
        %v493 = vpop.f32.mrb[0].mxu0
        %v494 = vadd.f32 %v288, %v493
        %v495 = vpop.f32.mrb[0].mxu0
        %496 = vmatprep.mubr.f32.mxu0 0.0
        %497 = vmatmul.mubr.f32.gmra.mrb[0].mxu0 %v319
        %v498 = vpop.f32.mrb[0].mxu0
        %v499 = vadd.f32 %v288, %v498
        %v500 = vpop.f32.mrb[0].mxu0
        %501 = vmatprep.mubr.f32.mxu0 0.0
        %502 = vmatmul.mubr.f32.gmra.mrb[0].mxu0 %v322
        %v503 = vpop.f32.mrb[0].mxu0
        %v504 = vadd.f32 %v288, %v503
        %v505 = vpop.f32.mrb[0].mxu0
        %506 = vmatprep.mubr.f32.mxu0 0.0
        %507 = vmatmul.mubr.f32.gmra.mrb[0].mxu0 %v325
        %v508 = vpop.f32.mrb[0].mxu0
        %v509 = vadd.f32 %v288, %v508
        %v510 = vpop.f32.mrb[0].mxu0
        %511 = vmatprep.mubr.f32.mxu0 0.0
        %512 = vmatmul.mubr.f32.gmra.mrb[0].mxu0 %v328
        %v513 = vpop.f32.mrb[0].mxu0
        %v514 = vadd.f32 %v288, %v513
        %v515 = vpop.f32.mrb[0].mxu0
        %516 = vmatprep.mubr.f32.mxu0 0.0
        %517 = vmatmul.mubr.f32.gmra.mrb[0].mxu0 %v331
        %v518 = vpop.f32.mrb[0].mxu0
        %v519 = vadd.f32 %v288, %v518
        %v520 = vpop.f32.mrb[0].mxu0
        %521 = vmatprep.mubr.f32.mxu0 0.0
        %522 = vmatmul.mubr.f32.gmra.mrb[0].mxu0 %v334
        %v523 = vpop.f32.mrb[0].mxu0
        %v524 = vadd.f32 %v288, %v523
        %v525 = vpop.f32.mrb[0].mxu0
        %526 = vmatprep.mubr.f32.mxu0 0.0
        %527 = vmatmul.mubr.f32.gmra.mrb[0].mxu0 %v337
        %v528 = vpop.f32.mrb[0].mxu0
        %v529 = vadd.f32 %v288, %v528
        %v530 = vpop.f32.mrb[0].mxu0
        %531 = vmatprep.mubr.f32.mxu0 0.0
        %532 = vmatmul.mubr.f32.gmra.mrb[0].mxu0 %v340
        %v533 = vpop.f32.mrb[0].mxu0
        %v534 = vadd.f32 %v288, %v533
        %v535 = vpop.f32.mrb[0].mxu0
        %536 = vmatprep.mubr.f32.mxu0 0.0
        %537 = vmatmul.mubr.f32.gmra.mrb[0].mxu0 %v343
        %v538 = vpop.f32.mrb[0].mxu0
        %v539 = vadd.f32 %v288, %v538
        %v540 = vpop.f32.mrb[0].mxu0
        %541 = vmatprep.mubr.f32.mxu0 0.0
        %542 = vmatmul.mubr.f32.gmra.mrb[0].mxu0 %v346
        %v543 = vpop.f32.mrb[0].mxu0
        %v544 = vadd.f32 %v288, %v543
        %v545 = vpop.f32.mrb[0].mxu0
        %546 = vmatprep.mubr.f32.mxu0 0.0
        %547 = vmatmul.mubr.f32.gmra.mrb[0].mxu0 %v349
        %v548 = vpop.f32.mrb[0].mxu0
        %v549 = vadd.f32 %v288, %v548
        %v550 = vpop.f32.mrb[0].mxu0
        %551 = vmatprep.mubr.f32.mxu0 0.0
        %552 = vmatmul.mubr.f32.gmra.mrb[0].mxu0 %v352
        %v553 = vpop.f32.mrb[0].mxu0
        %v554 = vadd.f32 %v288, %v553
        %v555 = vpop.f32.mrb[0].mxu0
        %556 = vmatprep.mubr.f32.mxu0 0.0
        %557 = vmatmul.mubr.f32.gmra.mrb[0].mxu0 %v355
        %v558 = vpop.f32.mrb[0].mxu0
        %v559 = vadd.f32 %v288, %v558
        %v560 = vpop.f32.mrb[0].mxu0
        %561 = vmatprep.mubr.f32.mxu0 0.0
        %562 = vmatmul.mubr.f32.gmra.mrb[0].mxu0 %v358
        %v563 = vpop.f32.mrb[0].mxu0
        %v564 = vadd.f32 %v288, %v563
        %v565 = vpop.f32.mrb[0].mxu0
        %566 = vmatprep.mubr.f32.mxu0 0.0
        %567 = vmatmul.mubr.f32.gmra.mrb[0].mxu0 %v361
        %v568 = vpop.f32.mrb[0].mxu0
        %v569 = vadd.f32 %v288, %v568
        %v570 = vpop.f32.mrb[0].mxu0
        %571 = vmatprep.mubr.f32.mxu0 0.0
        %572 = vmatmul.mubr.f32.gmra.mrb[0].mxu0 %v364
        %v573 = vpop.f32.mrb[0].mxu0
        %v574 = vadd.f32 %v288, %v573
        %v575 = vpop.f32.mrb[0].mxu0
        %576 = vmatprep.mubr.f32.mxu0 0.0
        %577 = vmatmul.mubr.f32.gmra.mrb[0].mxu0 %v367
        %v578 = vpop.f32.mrb[0].mxu0
        %v579 = vadd.f32 %v288, %v578
        %v580 = vpop.f32.mrb[0].mxu0
        %581 = vmatprep.mubr.f32.mxu0 0.0
        %582 = vmatmul.mubr.f32.gmra.mrb[0].mxu0 %v370
        %v583 = vpop.f32.mrb[0].mxu0
        %v584 = vadd.f32 %v288, %v583
        %v585 = vpop.f32.mrb[0].mxu0
        %586 = vmatprep.mubr.f32.mxu0 0.0
        %587 = vmatmul.mubr.f32.gmra.mrb[0].mxu0 %v373
        %v588 = vpop.f32.mrb[0].mxu0
        %v589 = vadd.f32 %v288, %v588
        %v590 = vpop.f32.mrb[0].mxu0
        %591 = vmatprep.mubr.f32.mxu0 0.0
        %592 = vmatmul.mubr.f32.gmra.mrb[0].mxu0 %v376
        %v593 = vpop.f32.mrb[0].mxu0
        %v594 = vadd.f32 %v288, %v593
        %v595 = vpop.f32.mrb[0].mxu0
        %596 = vmatprep.mubr.f32.mxu0 0.0
        %597 = vmatmul.mubr.f32.gmra.mrb[0].mxu0 %v379
        %v598 = vpop.f32.mrb[0].mxu0
        %v599 = vadd.f32 %v288, %v598
        %v600 = vpop.f32.mrb[0].mxu0
        %601 = vmatprep.mubr.f32.mxu0 0.0
        %602 = vmatmul.mubr.f32.gmra.mrb[0].mxu0 %v382
        %v603 = vpop.f32.mrb[0].mxu0
        %v604 = vadd.f32 %v288, %v603
        %v605 = vpop.f32.mrb[0].mxu0
        %606 = vmatprep.mubr.f32.mxu0 0.0
        %607 = vmatmul.mubr.f32.gmra.mrb[0].mxu0 %v385
        %v608 = vpop.f32.mrb[0].mxu0
        %v609 = vadd.f32 %v288, %v608
        %v610 = vpop.f32.mrb[0].mxu0
        %611 = vdwg.mxu0
        %v612 = vsub.f32 0.0, %v454
        %v613 = vsub.f32 0.0, %v459
        %v614 = vsub.f32 0.0, %v464
        %v615 = vsub.f32 0.0, %v469
        %v616 = vsub.f32 0.0, %v474
        %v617 = vsub.f32 0.0, %v479
        %v618 = vsub.f32 0.0, %v484
        %v619 = vsub.f32 0.0, %v489
        %v620 = vsub.f32 0.0, %v494
        %v621 = vsub.f32 0.0, %v499
        %v622 = vsub.f32 0.0, %v504
        %v623 = vsub.f32 0.0, %v509
        %v624 = vsub.f32 0.0, %v514
        %v625 = vsub.f32 0.0, %v519
        %v626 = vsub.f32 0.0, %v524
        %v627 = vsub.f32 0.0, %v529
        %v628 = vsub.f32 0.0, %v534
        %v629 = vsub.f32 0.0, %v539
        %v630 = vsub.f32 0.0, %v544
        %v631 = vsub.f32 0.0, %v549
        %v632 = vsub.f32 0.0, %v554
        %v633 = vsub.f32 0.0, %v559
        %v634 = vsub.f32 0.0, %v564
        %v635 = vsub.f32 0.0, %v569
        %v636 = vsub.f32 0.0, %v574
        %v637 = vsub.f32 0.0, %v579
        %v638 = vsub.f32 0.0, %v584
        %v639 = vsub.f32 0.0, %v589
        %v640 = vsub.f32 0.0, %v594
        %v641 = vsub.f32 0.0, %v599
        %v642 = vsub.f32 0.0, %v604
        %v643 = vsub.f32 0.0, %v609
        %v644 = vmul.f32 %v612, 1.442695
        %v645 = vpow.pop %v644
        %v646 = vmul.f32 %v613, 1.442695
        %v647 = vpow.pop %v646
        %v648 = vmul.f32 %v614, 1.442695
        %v649 = vpow.pop %v648
        %v650 = vmul.f32 %v615, 1.442695
        %v651 = vpow.pop %v650
        %v652 = vmul.f32 %v616, 1.442695
        %v653 = vpow.pop %v652
        %v654 = vmul.f32 %v617, 1.442695
        %v655 = vpow.pop %v654
        %v656 = vmul.f32 %v618, 1.442695
        %v657 = vpow.pop %v656
        %v658 = vmul.f32 %v619, 1.442695
        %v659 = vpow.pop %v658
        %v660 = vmul.f32 %v620, 1.442695
        %v661 = vpow.pop %v660
        %v662 = vmul.f32 %v621, 1.442695
        %v663 = vpow.pop %v662
        %v664 = vmul.f32 %v622, 1.442695
        %v665 = vpow.pop %v664
        %v666 = vmul.f32 %v623, 1.442695
        %v667 = vpow.pop %v666
        %v668 = vmul.f32 %v624, 1.442695
        %v669 = vpow.pop %v668
        %v670 = vmul.f32 %v625, 1.442695
        %v671 = vpow.pop %v670
        %v672 = vmul.f32 %v626, 1.442695
        %v673 = vpow.pop %v672
        %v674 = vmul.f32 %v627, 1.442695
        %v675 = vpow.pop %v674
        %v676 = vmul.f32 %v628, 1.442695
        %v677 = vpow.pop %v676
        %v678 = vmul.f32 %v629, 1.442695
        %v679 = vpow.pop %v678
        %v680 = vmul.f32 %v630, 1.442695
        %v681 = vpow.pop %v680
        %v682 = vmul.f32 %v631, 1.442695
        %v683 = vpow.pop %v682
        %v684 = vmul.f32 %v632, 1.442695
        %v685 = vpow.pop %v684
        %v686 = vmul.f32 %v633, 1.442695
        %v687 = vpow.pop %v686
        %v688 = vmul.f32 %v634, 1.442695
        %v689 = vpow.pop %v688
        %v690 = vmul.f32 %v635, 1.442695
        %v691 = vpow.pop %v690
        %v692 = vmul.f32 %v636, 1.442695
        %v693 = vpow.pop %v692
        %v694 = vmul.f32 %v637, 1.442695
        %v695 = vpow.pop %v694
        %v696 = vmul.f32 %v638, 1.442695
        %v697 = vpow.pop %v696
        %v698 = vmul.f32 %v639, 1.442695
        %v699 = vpow.pop %v698
        %v700 = vmul.f32 %v640, 1.442695
        %v701 = vpow.pop %v700
        %v702 = vmul.f32 %v641, 1.442695
        %v703 = vpow.pop %v702
        %v704 = vmul.f32 %v642, 1.442695
        %v705 = vpow.pop %v704
        %v706 = vmul.f32 %v643, 1.442695
        %v707 = vpow.pop %v706
        %v708 = vadd.f32 %v645, 1.0
        %v709 = vadd.f32 %v647, 1.0
        %v710 = vadd.f32 %v649, 1.0
        %v711 = vadd.f32 %v651, 1.0
        %v712 = vadd.f32 %v653, 1.0
        %v713 = vadd.f32 %v655, 1.0
        %v714 = vadd.f32 %v657, 1.0
        %v715 = vadd.f32 %v659, 1.0
        %v716 = vadd.f32 %v661, 1.0
        %v717 = vadd.f32 %v663, 1.0
        %v718 = vadd.f32 %v665, 1.0
        %v719 = vadd.f32 %v667, 1.0
        %v720 = vadd.f32 %v669, 1.0
        %v721 = vadd.f32 %v671, 1.0
        %v722 = vadd.f32 %v673, 1.0
        %v723 = vadd.f32 %v675, 1.0
        %v724 = vadd.f32 %v677, 1.0
        %v725 = vadd.f32 %v679, 1.0
        %v726 = vadd.f32 %v681, 1.0
        %v727 = vadd.f32 %v683, 1.0
        %v728 = vadd.f32 %v685, 1.0
        %v729 = vadd.f32 %v687, 1.0
        %v730 = vadd.f32 %v689, 1.0
        %v731 = vadd.f32 %v691, 1.0
        %v732 = vadd.f32 %v693, 1.0
        %v733 = vadd.f32 %v695, 1.0
        %v734 = vadd.f32 %v697, 1.0
        %v735 = vadd.f32 %v699, 1.0
        %v736 = vadd.f32 %v701, 1.0
        %v737 = vadd.f32 %v703, 1.0
        %v738 = vadd.f32 %v705, 1.0
        %v739 = vadd.f32 %v707, 1.0
        %v740 = vrcp.pop %v708
        %v741 = vrcp.pop %v709
        %v742 = vrcp.pop %v710
        %v743 = vrcp.pop %v711
        %v744 = vrcp.pop %v712
        %v745 = vrcp.pop %v713
        %v746 = vrcp.pop %v714
        %v747 = vrcp.pop %v715
        %v748 = vrcp.pop %v716
        %v749 = vrcp.pop %v717
        %v750 = vrcp.pop %v718
        %v751 = vrcp.pop %v719
        %v752 = vrcp.pop %v720
        %v753 = vrcp.pop %v721
        %v754 = vrcp.pop %v722
        %v755 = vrcp.pop %v723
        %v756 = vrcp.pop %v724
        %v757 = vrcp.pop %v725
        %v758 = vrcp.pop %v726
        %v759 = vrcp.pop %v727
        %v760 = vrcp.pop %v728
        %v761 = vrcp.pop %v729
        %v762 = vrcp.pop %v730
        %v763 = vrcp.pop %v731
        %v764 = vrcp.pop %v732
        %v765 = vrcp.pop %v733
        %v766 = vrcp.pop %v734
        %v767 = vrcp.pop %v735
        %v768 = vrcp.pop %v736
        %v769 = vrcp.pop %v737
        %v770 = vrcp.pop %v738
        %v771 = vrcp.pop %v739
        %v772 = vld [vmem:[%s3] sm:$0x1]
        %s773 = sld [smem:[#allocation2]]
        %v774 = vstv %s773
        %vm775 = vcmask 80896
        %v777 = vsel %vm775, %v772, 0
        %v780 = vsel %vm775, %v740, 0
        %v783 = vsel %vm775, %v741, 0
        %v786 = vsel %vm775, %v742, 0
        %v789 = vsel %vm775, %v743, 0
        %v792 = vsel %vm775, %v744, 0
        %v795 = vsel %vm775, %v745, 0
        %v798 = vsel %vm775, %v746, 0
        %v801 = vsel %vm775, %v747, 0
        %v804 = vsel %vm775, %v748, 0
        %v807 = vsel %vm775, %v749, 0
        %v810 = vsel %vm775, %v750, 0
        %v813 = vsel %vm775, %v751, 0
        %v816 = vsel %vm775, %v752, 0
        %v819 = vsel %vm775, %v753, 0
        %v822 = vsel %vm775, %v754, 0
        %v825 = vsel %vm775, %v755, 0
        %v828 = vsel %vm775, %v756, 0
        %v831 = vsel %vm775, %v757, 0
        %v834 = vsel %vm775, %v758, 0
        %v837 = vsel %vm775, %v759, 0
        %v840 = vsel %vm775, %v760, 0
        %v843 = vsel %vm775, %v761, 0
        %v846 = vsel %vm775, %v762, 0
        %v849 = vsel %vm775, %v763, 0
        %v852 = vsel %vm775, %v764, 0
        %v855 = vsel %vm775, %v765, 0
        %v858 = vsel %vm775, %v766, 0
        %v861 = vsel %vm775, %v767, 0
        %v864 = vsel %vm775, %v768, 0
        %v867 = vsel %vm775, %v769, 0
        %v870 = vsel %vm775, %v770, 0
        %v873 = vsel %vm775, %v771, 0
        %875 = vmatprep.subr.mxu0 0.0
        %876 = vmatpush1.xpose.msra.mxu0 %v780
        %877 = vmatprep.subr.mxu0 0.0
        %878 = vmatpush1.xpose.msra.mxu0 %v783
        %879 = vmatprep.subr.mxu0 0.0
        %880 = vmatpush1.xpose.msra.mxu0 %v786
        %881 = vmatprep.subr.mxu0 0.0
        %882 = vmatpush1.xpose.msra.mxu0 %v789
        %883 = vmatprep.subr.mxu0 0.0
        %884 = vmatpush1.xpose.msra.mxu0 %v792
        %885 = vmatprep.subr.mxu0 0.0
        %886 = vmatpush1.xpose.msra.mxu0 %v795
        %887 = vmatprep.subr.mxu0 0.0
        %888 = vmatpush1.xpose.msra.mxu0 %v798
        %889 = vmatprep.subr.mxu0 0.0
        %890 = vmatpush1.xpose.msra.mxu0 %v801
        %891 = vmatprep.subr.mxu0 0.0
        %892 = vmatpush1.xpose.msra.mxu0 %v804
        %893 = vmatprep.subr.mxu0 0.0
        %894 = vmatpush1.xpose.msra.mxu0 %v807
        %895 = vmatprep.subr.mxu0 0.0
        %896 = vmatpush1.xpose.msra.mxu0 %v810
        %897 = vmatprep.subr.mxu0 0.0
        %898 = vmatpush1.xpose.msra.mxu0 %v813
        %899 = vmatprep.subr.mxu0 0.0
        %900 = vmatpush1.xpose.msra.mxu0 %v816
        %901 = vmatprep.subr.mxu0 0.0
        %902 = vmatpush1.xpose.msra.mxu0 %v819
        %903 = vmatprep.subr.mxu0 0.0
        %904 = vmatpush1.xpose.msra.mxu0 %v822
        %905 = vmatprep.subr.mxu0 0.0
        %906 = vmatpush1.xpose.msra.mxu0 %v825
        %907 = vmatprep.subr.mxu0 0.0
        %908 = vmatpush1.xpose.msra.mxu0 %v828
        %909 = vmatprep.subr.mxu0 0.0
        %910 = vmatpush1.xpose.msra.mxu0 %v831
        %911 = vmatprep.subr.mxu0 0.0
        %912 = vmatpush1.xpose.msra.mxu0 %v834
        %913 = vmatprep.subr.mxu0 0.0
        %914 = vmatpush1.xpose.msra.mxu0 %v837
        %915 = vmatprep.subr.mxu0 0.0
        %916 = vmatpush1.xpose.msra.mxu0 %v840
        %917 = vmatprep.subr.mxu0 0.0
        %918 = vmatpush1.xpose.msra.mxu0 %v843
        %919 = vmatprep.subr.mxu0 0.0
        %920 = vmatpush1.xpose.msra.mxu0 %v846
        %921 = vmatprep.subr.mxu0 0.0
        %922 = vmatpush1.xpose.msra.mxu0 %v849
        %923 = vmatprep.subr.mxu0 0.0
        %924 = vmatpush1.xpose.msra.mxu0 %v852
        %925 = vmatprep.subr.mxu0 0.0
        %926 = vmatpush1.xpose.msra.mxu0 %v855
        %927 = vmatprep.subr.mxu0 0.0
        %928 = vmatpush1.xpose.msra.mxu0 %v858
        %929 = vmatprep.subr.mxu0 0.0
        %930 = vmatpush1.xpose.msra.mxu0 %v861
        %931 = vmatprep.subr.mxu0 0.0
        %932 = vmatpush1.xpose.msra.mxu0 %v864
        %933 = vmatprep.subr.mxu0 0.0
        %934 = vmatpush1.xpose.msra.mxu0 %v867
        %935 = vmatprep.subr.mxu0 0.0
        %936 = vmatpush1.xpose.msra.mxu0 %v870
        %937 = vmatprep.subr.mxu0 0.0
        %938 = vmatpush1.xpose.msra.mxu0 %v873
        %939 = vmatprep.mubr.f32.mxu0 0.0
        %940 = vmatmul.mubr.f32.gmra.mrb[0].mxu0 %v777
        %v941 = vpop.f32.mrb[0].mxu0
        %v942 = vadd.f32 %v774, %v941
        %v943 = vpop.f32.mrb[0].mxu0
        %v944 = vadd.f32 %v774, %v943
        %945 = vdwg.mxu0
        %v948 = vcombine.low %v942, %v944
        %v950 = vunpack.c.l.s4 1966171168
        %v951 = vunpack.c.0.s8 %v950
        %v952 = vlaneseq
        %v953 = vshrl.u32 %v952, 7
        %v954 = vsub.s32 %v951, %v953
        %v955 = vrot.slane %v948, %v954
        %v957 = vunpack.c.l.s4 1966171168
        %v958 = vunpack.c.0.s8 %v957
        %v959 = vlaneseq
        %v960 = vshrl.u32 %v959, 7
        %v961 = vsub.s32 %v958, %v960
        %v962 = vrot.slane %v955, %v961
        %v964 = vlaneseq
        %vm965 = vcmp.ge.s32.totalorder %v964, 0
        %vm966 = vcmp.lt.s32.totalorder %v964, 256
        %vm967 = vmand %vm965, %vm966
        %968 = vst.msk [vmem:[%s231] sm:$0x3] %vm967, %v962
        %s969 = sand.u32 %s138, 1
        %s970 = scalar_lea.sflag [#allocation4], %s969
        %s971 = sand.u32 %s138, 1
        %s972 = smul.addr %s971, 2
        %s973 = scalar_lea.vmem [#allocation3], %s972
        // Predicated region
        $region41: #{tpu_custom_call.1} parent=39 // pred_check
          %p974 = pneg %p148
        $region42: #{tpu_custom_call.1} parent=39 // pred_check_branch
          %976 = sbr.rel (%p974) target = $region44
        $region43: #{tpu_custom_call.1} parent=39 // pred_region
          %s977 = smul.u32 2, %s20
          %s979 = ssub.s32 32, 32
          %980 = vsyncadd %s970, %s979
          %s981 = smul.addr %s977, 16
          %s982 = scalar_lea.hbm %s5, %s981
          %s984 = sshll.u32 %s973, 4
          %s985 = int_to_ptr.vmem [resolvable:$true] %s984
          %987 = dma.vmem_to_hbm [thread:$0]  %s985, 32, %s982, %s970
        $region44: #{tpu_custom_call.1} parent=39 // pred_fallthru
          _
      $region40: #{tpu_custom_call.1} parent=5 // pred_fallthru
        _
      %p988 = scmp.le.s32.totalorder 2, %s15
      // Predicated region
      $region45: #{tpu_custom_call.1} parent=5 // pred_check
        %p989 = pneg %p988
      $region46: #{tpu_custom_call.1} parent=5 // pred_check_branch
        %991 = sbr.rel (%p989) target = $region48
      $region47: #{tpu_custom_call.1} parent=5 // pred_region
        %s992 = ssub.s32 %s15, 2
        // Predicated region
        $region49: #{tpu_custom_call.1} parent=47 // pred_check
          %p993 = pneg %p154
        $region50: #{tpu_custom_call.1} parent=47 // pred_check_branch
          %995 = sbr.rel (%p993) target = $region52
        $region51: #{tpu_custom_call.1} parent=47 // pred_region
          %s996 = sand.u32 %s139, 1
          %s997 = scalar_lea.sflag [#allocation4], %s996
          %s998 = sand.u32 %s139, 1
          %s999 = smul.addr %s998, 2
          %s1000 = scalar_lea.vmem [#allocation3], %s999
          %1001 = dma.done %s997, 32
        $region52: #{tpu_custom_call.1} parent=47 // pred_fallthru
          _
      $region48: #{tpu_custom_call.1} parent=5 // pred_fallthru
        _
    $region6: #{tpu_custom_call.1} parent=1 // loop_footer
      %s19 = sadd.s32 1, %s15
    $region7: #{tpu_custom_call.1} parent=1 // loop_footer_branch
      %14 = sbr.rel target = $region3
    $region8: #{tpu_custom_call.1} parent=1 // loop_exit
      _
    %1002 = vsyncpa [#allocation4], 1
    %s1003 = scalar_lea.sflag [#allocation4], 1
    %1004 = vsyncpa %s1003, 1

</llo_original>
